<compile_context>
chip_gen: v7x
topology: tpu7x:2x2x1
jax: 0.10.0
libtpu: 0.0.40
codegen_flags: <defaults>
</compile_context>

<pallas_src>
import functools
import math

import jax
import jax.numpy as jnp
from jax.experimental import pallas as pl
from jax.experimental.pallas import tpu as pltpu

VOCAB_SIZE = 7  # len(allowable_synthesis_features['synth_type'])

# Double-buffered f32 output tile at this cap is 2 * 512 * (L*D) * 4 B
# (= 1 MiB for L*D = 256) -- comfortably inside even v7x's VMEM budget.
_ROW_TILE_CAP = 512


def _embed_kernel(xexp_ref, vid_ref, w2_ref, o_ref, *, activation_fn):
    """Embedding lookup as a one-hot matmul on the MXU.

    xexp_ref: (TB, L*V) int32  -- x[b, l] repeated V times along lanes
    vid_ref : (1,  L*V) int32  -- vocab id per lane (lane % V), pinned
    w2_ref  : (L*V, L*D) f32   -- W2[(l,v),(m,d)] = (l==m) * emb[v, d], pinned
    o_ref   : (TB, L*D) f32    -- concatenated embeddings (lane-dense)
    """
    # Single VPU compare + cast; all index expansion was hoisted to the wrapper.
    onehot = (xexp_ref[...] == vid_ref[...]).astype(w2_ref.dtype)   # (TB, L*V)
    # One MXU pass straight into the lane-dense output layout.
    out = jnp.dot(onehot, w2_ref[...], preferred_element_type=jnp.float32)
    if activation_fn is not None:
        out = activation_fn(out)
    o_ref[...] = out.astype(o_ref.dtype)


def synth_flow_encoder_forward(x, emb_weight, activation_fn=None):
    """x: (B, L) int indices. emb_weight: (V, D) float.

    Returns (B, L*D), matching torch.cat of per-position embeddings.
    Dropout with p=0.0 is the identity and is omitted.
    """
    B, L = x.shape
    V, D = emb_weight.shape
    LD, LV = L * D, L * V

    x = x.astype(jnp.int32)

    # ---- hoisted, data-independent prep (tiny arrays, once per call) ----
    # Lane (l*V + v) of row b holds x[b, l].
    x_exp = jnp.repeat(x, V, axis=1)                                  # (B, L*V)
    # Vocab id per lane: vid[0, l*V + v] = v.
    vid = jnp.tile(jnp.arange(V, dtype=jnp.int32), L)[None, :]        # (1, L*V)
    # Combined one-hot table: W2[(l,v), (m,d)] = (l == m) * emb_weight[v, d].
    w2 = jnp.einsum(
        "lm,vd->lvmd", jnp.eye(L, dtype=emb_weight.dtype), emb_weight
    ).reshape(LV, LD)                                                 # (L*V, L*D)

    # Fixed row tile + cdiv grid; Pallas masks the ragged last block.
    tb = B if B <= _ROW_TILE_CAP else _ROW_TILE_CAP
    grid = (pl.cdiv(B, tb),)

    kernel = functools.partial(_embed_kernel, activation_fn=activation_fn)

    cost = pl.CostEstimate(
        flops=2 * B * LV * LD,
        transcendentals=(B * LD) if activation_fn is not None else 0,
        bytes_accessed=(B * LV + LV + LV * LD + B * LD) * 4,
    )

    out = pl.pallas_call(
        kernel,
        out_shape=jax.ShapeDtypeStruct((B, LD), emb_weight.dtype),
        grid_spec=pltpu.PrefetchScalarGridSpec(
            num_scalar_prefetch=0,
            grid=grid,
            in_specs=[
                pl.BlockSpec((tb, LV), lambda i: (i, 0)),   # row tile of expanded idx
                pl.BlockSpec((1, LV), lambda i: (0, 0)),    # vocab-id lanes, pinned
                pl.BlockSpec((LV, LD), lambda i: (0, 0)),   # combined table, pinned
            ],
            out_specs=pl.BlockSpec((tb, LD), lambda i: (i, 0)),
        ),
        compiler_params=pltpu.CompilerParams(
            dimension_semantics=("parallel",),   # shard row tiles across TCs on v7x
        ),
        cost_estimate=cost,
    )(x_exp, vid, w2)

    return out


def init_embedding(key, vocab_size, emb_dim):
    """Deterministic xavier_uniform init matching torch.nn.init.xavier_uniform_."""
    bound = math.sqrt(6.0 / (vocab_size + emb_dim))
    return jax.random.uniform(
        key, (vocab_size, emb_dim), minval=-bound, maxval=bound, dtype=jnp.float32
    )


if __name__ == "__main__":
    key = jax.random.PRNGKey(0)
    k_w, k_x = jax.random.split(key)

    B, L, emb_dim = 2, 8, 32  # batch of 2 synthesis flows, each of length 8

    emb_weight = init_embedding(k_w, VOCAB_SIZE, emb_dim)
    x = jax.random.randint(k_x, (B, L), 0, VOCAB_SIZE, dtype=jnp.int32)

    out = synth_flow_encoder_forward(x, emb_weight, activation_fn=None)
    out = jax.block_until_ready(out)

    # Reference check in plain JAX (gather + concat along feature dim).
    ref = emb_weight[x].reshape(B, L * emb_dim)
    assert out.shape == (B, L * emb_dim)
    assert jnp.allclose(out, ref, atol=1e-5), "mismatch vs reference"

    print("KERNEL_OK")
</pallas_src>

<mosaic_0001>
module attributes {stable_mosaic.version = 11 : i64} {
  func.func @_embed_kernel(%arg0: i32, %arg1: memref<2x56xi32, #tpu.memory_space<vmem>>, %arg2: memref<1x56xi32, #tpu.memory_space<vmem>>, %arg3: memref<56x256xf32, #tpu.memory_space<vmem>>, %arg4: memref<2x256xf32, #tpu.memory_space<vmem>>) attributes {dimension_semantics = [#tpu.dimension_semantics<parallel>], iteration_bounds = array<i64: 1>, scalar_prefetch = 0 : i64, scratch_operands = 0 : i64, tpu.core_type = #tpu.core_type<tc>, window_params = [{transform_indices = @transform_0, window_bounds = array<i64: 2, 56>}, {pipeline_mode = #tpu.pipeline_mode<synchronous>, transform_indices = @transform_1, window_bounds = array<i64: 1, 56>}, {pipeline_mode = #tpu.pipeline_mode<synchronous>, transform_indices = @transform_2, window_bounds = array<i64: 56, 256>}, {transform_indices = @transform_3, window_bounds = array<i64: 2, 256>}]} {
    %c0 = arith.constant 0 : index
    %c0_0 = arith.constant 0 : index
    %0 = vector.load %arg1[%c0, %c0_0] : memref<2x56xi32, #tpu.memory_space<vmem>>, vector<2x56xi32>
    %c0_1 = arith.constant 0 : index
    %c0_2 = arith.constant 0 : index
    %1 = vector.load %arg2[%c0_1, %c0_2] : memref<1x56xi32, #tpu.memory_space<vmem>>, vector<1x56xi32>
    %2 = vector.broadcast %1 : vector<1x56xi32> to vector<2x56xi32>
    %3 = arith.cmpi eq, %0, %2 : vector<2x56xi32>
    %4 = arith.extui %3 : vector<2x56xi1> to vector<2x56xi32>
    %5 = arith.sitofp %4 : vector<2x56xi32> to vector<2x56xf32>
    %c0_3 = arith.constant 0 : index
    %c0_4 = arith.constant 0 : index
    %6 = vector.load %arg3[%c0_3, %c0_4] : memref<56x256xf32, #tpu.memory_space<vmem>>, vector<56x256xf32>
    %cst = arith.constant dense<0.000000e+00> : vector<2x256xf32>
    %7 = tpu.matmul %5, %6, %cst {dimension_numbers = #tpu.dot_dimension_numbers<[1], [0], [0], [1], [0, 0, 1, 1], [], []>} : vector<2x56xf32>, vector<56x256xf32>, vector<2x256xf32> -> vector<2x256xf32>
    %c0_5 = arith.constant 0 : index
    %c0_6 = arith.constant 0 : index
    %8 = vector.load %arg4[%c0_5, %c0_6] : memref<2x256xf32, #tpu.memory_space<vmem>>, vector<2x256xf32>
    tpu.vector_store %arg4[%c0_5, %c0_6], %7 {strides = array<i32>} : memref<2x256xf32, #tpu.memory_space<vmem>>, vector<2x256xf32>,
    return
  }
  func.func @transform_0(%arg0: i32) -> (i32, i32) {
    %c0_i32 = arith.constant 0 : i32
    %c0_i32_0 = arith.constant 0 : i32
    return %arg0, %c0_i32 : i32, i32
  }
  func.func @transform_1(%arg0: i32) -> (i32, i32) {
    %c0_i32 = arith.constant 0 : i32
    %c0_i32_0 = arith.constant 0 : i32
    %c0_i32_1 = arith.constant 0 : i32
    return %c0_i32, %c0_i32_0 : i32, i32
  }
  func.func @transform_2(%arg0: i32) -> (i32, i32) {
    %c0_i32 = arith.constant 0 : i32
    %c0_i32_0 = arith.constant 0 : i32
    %c0_i32_1 = arith.constant 0 : i32
    return %c0_i32, %c0_i32_0 : i32, i32
  }
  func.func @transform_3(%arg0: i32) -> (i32, i32) {
    %c0_i32 = arith.constant 0 : i32
    %c0_i32_0 = arith.constant 0 : i32
    return %arg0, %c0_i32 : i32, i32
  }
}

</mosaic_0001>

<llo_original>
// kernel: tpu_custom_call.1
$region0: #{tpu_custom_call.1}
  #allocation0 [shape = 'u32[]', space=smem, size = 0x4, offset = 0x4, fixed_abs, tag = 'smem constant byte address 0x4 - core index']
  #allocation1 [shape = 'u32[144,128]{1,0:T(1,128)}', space=vmem, size = 0x12000, scoped, tag = 'internal scratch']
  %s0 = inlined_call_operand.hbm [shape: s32[2,56], index: 0, kind: input, shape index: {}]
  %s1 = inlined_call_operand.vmem [shape: s32[1,56], index: 1, kind: input, shape index: {}]
  %s2 = inlined_call_operand.hbm [shape: f32[56,256], index: 2, kind: input, shape index: {}]
  %s3 = inlined_call_operand.hbm [shape: f32[2,256], index: 3, kind: output, shape index: {}]
  %s4 = sld [smem:[#allocation0]]
  $region30: #{tpu_custom_call.1} parent=0
    _
  %s6 = ssub.s32 1, %s4
  %s7 = scalar_select 0, %s6, %s4
  $region1: #{tpu_custom_call.1} parent=0
    #allocation2 [shape = 'u8[1024]{0}', space=vmem, size = 0x400, scoped, tag = 'input window, operand 0, single buffered']
    #allocation3 [shape = 's32[1]{0}', space=sflag, size = 0x4, scoped, tag = 'scoped memory for tpu_custom_call.1']
    #allocation4 [shape = 's32[1]{0}', space=sflag, size = 0x4, scoped, tag = 'scoped memory for tpu_custom_call.1']
    #allocation5 [shape = 'u8[57344]{0}', space=vmem, size = 0xe000, scoped, tag = 'input window, operand 2, single buffered']
    #allocation6 [shape = 's32[1]{0}', space=sflag, size = 0x4, scoped, tag = 'scoped memory for tpu_custom_call.1']
    #allocation7 [shape = 'u8[2048]{0}', space=vmem, size = 0x800, scoped, tag = 'output window, operand 0, single buffered']
    %8 = vsyncpa [#allocation3], 0
    %9 = vsyncpa [#allocation6], 0
    %10 = vsyncpa [#allocation4], 0
    // Predicated region
    $region2: #{tpu_custom_call.1} parent=1 // pred_check
      _
    $region3: #{tpu_custom_call.1} parent=1 // pred_check_branch
      %12 = sbr.rel (0) target = $region5
    $region4: #{tpu_custom_call.1} parent=1 // pred_region
      %s14 = ssub.s32 32, 32
      %15 = vsyncadd [#allocation3], %s14
      %s17 = sshll.u32 [#allocation2], 4
      %s18 = int_to_ptr.vmem [resolvable:$true] %s17
      %20 = dma.hbm_to_vmem [thread:$0]  %s0, 32, %s18, [#allocation3]
    $region5: #{tpu_custom_call.1} parent=1 // pred_fallthru
      _
    // Predicated region
    $region6: #{tpu_custom_call.1} parent=1 // pred_check
      _
    $region7: #{tpu_custom_call.1} parent=1 // pred_check_branch
      %22 = sbr.rel (0) target = $region9
    $region8: #{tpu_custom_call.1} parent=1 // pred_region
      _
    $region9: #{tpu_custom_call.1} parent=1 // pred_fallthru
      _
    // Predicated region
    $region10: #{tpu_custom_call.1} parent=1 // pred_check
      _
    $region11: #{tpu_custom_call.1} parent=1 // pred_check_branch
      %24 = sbr.rel (0) target = $region13
    $region12: #{tpu_custom_call.1} parent=1 // pred_region
      %s26 = ssub.s32 1792, 1792
      %27 = vsyncadd [#allocation6], %s26
      %s28 = sshll.u32 [#allocation5], 4
      %s29 = int_to_ptr.vmem [resolvable:$true] %s28
      %34 = dma.hbm_to_vmem [thread:$0]  %s2, 1792, %s29, [#allocation6], 256, 256, 16
    $region13: #{tpu_custom_call.1} parent=1 // pred_fallthru
      _
    // Predicated region
    $region14: #{tpu_custom_call.1} parent=1 // pred_check
      _
    $region15: #{tpu_custom_call.1} parent=1 // pred_check_branch
      %36 = sbr.rel (0) target = $region17
    $region16: #{tpu_custom_call.1} parent=1 // pred_region
      %37 = dma.done [#allocation3], 32
    $region17: #{tpu_custom_call.1} parent=1 // pred_fallthru
      _
    // Predicated region
    $region18: #{tpu_custom_call.1} parent=1 // pred_check
      _
    $region19: #{tpu_custom_call.1} parent=1 // pred_check_branch
      %39 = sbr.rel (0) target = $region21
    $region20: #{tpu_custom_call.1} parent=1 // pred_region
      %40 = dma.done [#allocation6], 1792
    $region21: #{tpu_custom_call.1} parent=1 // pred_fallthru
      _
    %v41 = vld [vmem:[#allocation2] sm:$0x3]
    %v42 = vld [vmem:[%s1] sm:$0x1]
    %v43 = vlaneseq
    %v44 = vshrl.u32 %v43, 7
    %v45 = vsub.s32 0, %v44
    %v46 = vrot.slane %v42, %v45
    %vm47 = vcmp.eq.s32.totalorder %v41, %v46
    %v48 = vsel %vm47, 1, 0
    %v49 = vcvt.s32.f32 %v48
    %v50 = vld [vmem:[#allocation5] sm:$0xff]
    %v51 = vld [vmem:[#allocation5 + $0x8] sm:$0xff]
    %v52 = vld [vmem:[#allocation5 + $0x10] sm:$0xff]
    %v53 = vld [vmem:[#allocation5 + $0x18] sm:$0xff]
    %v54 = vld [vmem:[#allocation5 + $0x20] sm:$0xff]
    %v55 = vld [vmem:[#allocation5 + $0x28] sm:$0xff]
    %v56 = vld [vmem:[#allocation5 + $0x30] sm:$0xff]
    %v57 = vld [vmem:[#allocation5 + $0x38] sm:$0xff]
    %v58 = vld [vmem:[#allocation5 + $0x40] sm:$0xff]
    %v59 = vld [vmem:[#allocation5 + $0x48] sm:$0xff]
    %v60 = vld [vmem:[#allocation5 + $0x50] sm:$0xff]
    %v61 = vld [vmem:[#allocation5 + $0x58] sm:$0xff]
    %v62 = vld [vmem:[#allocation5 + $0x60] sm:$0xff]
    %v63 = vld [vmem:[#allocation5 + $0x68] sm:$0xff]
    %vm64 = vcmask 457728
    %v66 = vsel %vm64, %v49, 0
    %68 = vmatprep.subr.mxu0 %v51
    %69 = vmatpush1.msra.mxu0 %v50
    %70 = vmatprep.subr.mxu0 %v53
    %71 = vmatpush1.msra.mxu0 %v52
    %72 = vmatprep.subr.mxu0 %v55
    %73 = vmatpush1.msra.mxu0 %v54
    %74 = vmatprep.subr.mxu0 %v57
    %75 = vmatpush1.msra.mxu0 %v56
    %76 = vmatprep.subr.mxu0 %v59
    %77 = vmatpush1.msra.mxu0 %v58
    %78 = vmatprep.subr.mxu0 %v61
    %79 = vmatpush1.msra.mxu0 %v60
    %80 = vmatprep.subr.mxu0 %v63
    %81 = vmatpush1.msra.mxu0 %v62
    %82 = vmatprep.subr.mxu0 0.0
    %83 = vmatpush1.msra.mxu0 0.0
    %84 = vmatprep.subr.mxu0 0.0
    %85 = vmatpush1.msra.mxu0 0.0
    %86 = vmatprep.subr.mxu0 0.0
    %87 = vmatpush1.msra.mxu0 0.0
    %88 = vmatprep.subr.mxu0 0.0
    %89 = vmatpush1.msra.mxu0 0.0
    %90 = vmatprep.subr.mxu0 0.0
    %91 = vmatpush1.msra.mxu0 0.0
    %92 = vmatprep.subr.mxu0 0.0
    %93 = vmatpush1.msra.mxu0 0.0
    %94 = vmatprep.subr.mxu0 0.0
    %95 = vmatpush1.msra.mxu0 0.0
    %96 = vmatprep.subr.mxu0 0.0
    %97 = vmatpush1.msra.mxu0 0.0
    %98 = vmatprep.subr.mxu0 0.0
    %99 = vmatpush1.msra.mxu0 0.0
    %100 = vmatprep.subr.mxu0 0.0
    %101 = vmatpush1.msra.mxu0 0.0
    %102 = vmatprep.subr.mxu0 0.0
    %103 = vmatpush1.msra.mxu0 0.0
    %104 = vmatprep.subr.mxu0 0.0
    %105 = vmatpush1.msra.mxu0 0.0
    %106 = vmatprep.subr.mxu0 0.0
    %107 = vmatpush1.msra.mxu0 0.0
    %108 = vmatprep.subr.mxu0 0.0
    %109 = vmatpush1.msra.mxu0 0.0
    %110 = vmatprep.subr.mxu0 0.0
    %111 = vmatpush1.msra.mxu0 0.0
    %112 = vmatprep.subr.mxu0 0.0
    %113 = vmatpush1.msra.mxu0 0.0
    %114 = vmatprep.subr.mxu0 0.0
    %115 = vmatpush1.msra.mxu0 0.0
    %116 = vmatprep.subr.mxu0 0.0
    %117 = vmatpush1.msra.mxu0 0.0
    %118 = vmatprep.subr.mxu0 0.0
    %119 = vmatpush1.msra.mxu0 0.0
    %120 = vmatprep.subr.mxu0 0.0
    %121 = vmatpush1.msra.mxu0 0.0
    %122 = vmatprep.subr.mxu0 0.0
    %123 = vmatpush1.msra.mxu0 0.0
    %124 = vmatprep.subr.mxu0 0.0
    %125 = vmatpush1.msra.mxu0 0.0
    %126 = vmatprep.subr.mxu0 0.0
    %127 = vmatpush1.msra.mxu0 0.0
    %128 = vmatprep.subr.mxu0 0.0
    %129 = vmatpush1.msra.mxu0 0.0
    %130 = vmatprep.subr.mxu0 0.0
    %131 = vmatpush1.msra.mxu0 0.0
    %132 = vmatprep.mubr.f32.mxu0 0.0
    %133 = vmatmul.mubr.f32.gmra.mrb[0].mxu0 %v66
    %v134 = vpop.f32.mrb[0].mxu0
    %v135 = vadd.f32 0.0, %v134
    %v136 = vpop.f32.mrb[0].mxu0
    %v137 = vadd.f32 0.0, %v136
    %138 = vdwg.mxu0
    %v141 = vcombine.low %v135, %v137
    %v143 = vunpack.c.l.s4 1983009808
    %v144 = vunpack.c.0.s8 %v143
    %v145 = vlaneseq
    %v146 = vshrl.u32 %v145, 7
    %v147 = vsub.s32 %v144, %v146
    %v148 = vrot.slane %v141, %v147
    %150 = vst [vmem:[#allocation7] sm:$0xf] %v148
    // Predicated region
    $region22: #{tpu_custom_call.1} parent=1 // pred_check
      _
    $region23: #{tpu_custom_call.1} parent=1 // pred_check_branch
      %152 = sbr.rel (0) target = $region25
    $region24: #{tpu_custom_call.1} parent=1 // pred_region
      %s154 = ssub.s32 64, 64
      %155 = vsyncadd [#allocation4], %s154
      %s157 = sshll.u32 [#allocation7], 4
      %s158 = int_to_ptr.vmem [resolvable:$true] %s157
      %160 = dma.vmem_to_hbm [thread:$0]  %s158, 64, %s3, [#allocation4]
    $region25: #{tpu_custom_call.1} parent=1 // pred_fallthru
      _
    // Predicated region
    $region26: #{tpu_custom_call.1} parent=1 // pred_check
      _
    $region27: #{tpu_custom_call.1} parent=1 // pred_check_branch
      %162 = sbr.rel (0) target = $region29
    $region28: #{tpu_custom_call.1} parent=1 // pred_region
      %163 = dma.done [#allocation4], 64
    $region29: #{tpu_custom_call.1} parent=1 // pred_fallthru
      _
    %164 = vsyncpa [#allocation3], 1
    %165 = vsyncpa [#allocation6], 1
    %166 = vsyncpa [#allocation4], 1

</llo_original>
